<compile_context>
chip_gen: v5e
topology: v5e:2x2
jax: 0.10.0
libtpu: 0.0.40
codegen_flags: <defaults>
</compile_context>

<pallas_src>
import functools

import jax
import jax.numpy as jnp
from jax.experimental import pallas as pl
from jax.experimental.pallas import tpu as pltpu


def _round_up(x, m):
    return (x + m - 1) // m * m


def patch_embed_kernel(x_ref, w_ref, p_ref, o_ref, *, true_e, e_pad, eps):
    # x_ref: (tile_n, K)     streamed patch rows (bf16 or f32)
    # w_ref: (K, E_pad)      VMEM-resident projection weight
    # p_ref: (8, E_pad) f32  row 0: bias, 1: gamma, 2: beta, 3: lane mask
    # o_ref: (tile_n, E_pad) lane-dense output tile
    y = jnp.dot(x_ref[...], w_ref[...], preferred_element_type=jnp.float32)
    y = y + p_ref[0:1, :]                         # padded lanes stay exactly 0

    inv_e = 1.0 / float(true_e)
    mean = jnp.sum(y, axis=-1, keepdims=True) * inv_e
    centered = y - mean
    if e_pad != true_e:
        # Precomputed (1, E_pad) 0/1 mask: zero the padded lanes before the
        # variance sum (cheaper than a per-block tile_n x E_pad iota+where).
        centered = centered * p_ref[3:4, :]
    var = jnp.sum(centered * centered, axis=-1, keepdims=True) * inv_e
    y_hat = centered * jax.lax.rsqrt(var + eps)
    o_ref[...] = (y_hat * p_ref[1:2, :] + p_ref[2:3, :]).astype(o_ref.dtype)


def patch_embed(x, conv_w, conv_b, ln_g, ln_b, patch_size, *,
                tile_n=None, compute_dtype=jnp.bfloat16, out_dtype=None,
                eps=1e-5, return_padded=False):
    """x: (B, C, H, W) NCHW.  conv_w: (E, C, ps, ps).  Returns (B, Hp*Wp, E)."""
    B, C, H, W = x.shape
    ps = patch_size
    E = conv_w.shape[0]
    assert H % ps == 0 and W % ps == 0
    Hp, Wp = H // ps, W // ps
    N = B * Hp * Wp
    K = C * ps * ps

    out_dtype = x.dtype if out_dtype is None else out_dtype
    compute_dtype = jnp.dtype(compute_dtype)

    # --- patchify: NCHW -> (N, K) patch matrix, inner order (c, i, j) matching
    # the Conv2d weight layout so the stride==kernel conv is a plain matmul.
    # allow_input_fusion (below) lets XLA fuse this transpose/convert into the
    # Pallas call instead of materializing xp in HBM.
    xp = x.reshape(B, C, Hp, ps, Wp, ps)
    xp = xp.transpose(0, 2, 4, 1, 3, 5).reshape(N, K).astype(compute_dtype)

    # --- projection weight (E, C, ps, ps) -> (K, E_pad); E padded to 128 lanes
    # so output stores are lane-dense (unmasked vst).
    E_pad = _round_up(E, 128)
    w = conv_w.reshape(E, K).T.astype(compute_dtype)
    if E_pad != E:
        w = jnp.pad(w, ((0, 0), (0, E_pad - E)))

    # --- bias / gamma / beta / lane-mask stacked into one resident (8, E_pad).
    def _row(v):
        v = jnp.asarray(v, jnp.float32).reshape(1, E)
        return jnp.pad(v, ((0, 0), (0, E_pad - E))) if E_pad != E else v

    params = jnp.concatenate(
        [_row(conv_b), _row(ln_g), _row(ln_b),
         _row(jnp.ones((E,), jnp.float32)),          # lane mask (1 on true E)
         jnp.zeros((4, E_pad), jnp.float32)], axis=0)

    in_bytes = compute_dtype.itemsize
    out_bytes = jnp.dtype(out_dtype).itemsize

    # --- generation-gated VMEM budget (v5e scoped default is only 16 MiB,
    # v7x has 64 MiB physical per TC; v5e/v6e have 128 MiB physical).
    try:
        vmem_cap = int(pltpu.get_tpu_info().vmem_capacity_bytes)
    except Exception:
        vmem_cap = 64 << 20
    vmem_limit = int(min(vmem_cap // 2, 48 << 20))

    # Sublane granularity is dtype-dependent (packed sublanes).
    sub = {4: 8, 2: 16, 1: 32}.get(in_bytes, 8)

    # --- size tile_n from streamed bytes/row: double-buffered x & out blocks
    # plus ~3 f32 LN temporaries per row, after subtracting the resident
    # weight/params buffers (counted double-buffered to stay conservative).
    resident = 2 * K * E_pad * in_bytes + 2 * 8 * E_pad * 4
    per_row = 2 * K * in_bytes + 2 * E_pad * out_bytes + 3 * E_pad * 4
    if tile_n is None:
        budget = max(vmem_limit - resident, 2 << 20) // 2
        tile_n = int(budget // per_row)
    tile_n = max(sub, _round_up(int(tile_n), sub))
    tile_n = min(tile_n, 8192)
    if tile_n >= N:
        tile_n = N                       # single block; full-dim layout escape
    grid = (pl.cdiv(N, tile_n),)         # ragged last block -> masked stores

    cost = pl.CostEstimate(
        flops=2 * N * K * E_pad,
        transcendentals=0,
        bytes_accessed=(N * K * in_bytes + K * E_pad * in_bytes
                        + N * E_pad * out_bytes + 8 * E_pad * 4),
    )

    kernel = functools.partial(patch_embed_kernel, true_e=E, e_pad=E_pad,
                               eps=eps)

    out = pl.pallas_call(
        kernel,
        out_shape=jax.ShapeDtypeStruct((N, E_pad), out_dtype),
        grid_spec=pltpu.PrefetchScalarGridSpec(
            num_scalar_prefetch=0,
            grid=grid,
            in_specs=[
                pl.BlockSpec((tile_n, K), lambda i: (i, 0)),   # streamed rows
                pl.BlockSpec((K, E_pad), lambda i: (0, 0)),    # resident weight
                pl.BlockSpec((8, E_pad), lambda i: (0, 0)),    # resident params
            ],
            out_specs=pl.BlockSpec((tile_n, E_pad), lambda i: (i, 0)),
        ),
        compiler_params=pltpu.CompilerParams(
            dimension_semantics=("parallel",),
            vmem_limit_bytes=vmem_limit,
            allow_input_fusion=[True, False, False],
        ),
        cost_estimate=cost,
    )(xp, w, params)

    out = out.reshape(B, Hp * Wp, E_pad)
    if return_padded:
        return out                       # padded lanes (>= E) are exactly 0
    return out if E_pad == E else out[..., :E]


if __name__ == "__main__":
    # Small shapes consistent with the module: img_size=16, patch_size=4,
    # in_channel=4, embed_dim=32, batch=2.
    B, C, H, W = 2, 4, 16, 16
    ps, E = 4, 32

    key = jax.random.PRNGKey(0)
    kx, kw, kb = jax.random.split(key, 3)
    x = jax.random.normal(kx, (B, C, H, W), dtype=jnp.float32)
    conv_w = jax.random.normal(kw, (E, C, ps, ps), dtype=jnp.float32) * 0.05
    conv_b = jax.random.normal(kb, (E,), dtype=jnp.float32) * 0.05
    ln_g = jnp.ones((E,), dtype=jnp.float32)
    ln_b = jnp.zeros((E,), dtype=jnp.float32)

    # Pure-JAX reference of the same math.
    Hp, Wp = H // ps, W // ps
    xr = x.reshape(B, C, Hp, ps, Wp, ps).transpose(0, 2, 4, 1, 3, 5)
    xr = xr.reshape(B * Hp * Wp, -1)
    ref = xr @ conv_w.reshape(E, -1).T + conv_b
    mu = ref.mean(-1, keepdims=True)
    var = ((ref - mu) ** 2).mean(-1, keepdims=True)
    ref = ((ref - mu) / jnp.sqrt(var + 1e-5) * ln_g + ln_b)
    ref = ref.reshape(B, Hp * Wp, E)

    # f32 path; tile_n=24 with N=32 forces a ragged last block so the masked
    # boundary-store path (which replaced the jnp.pad copy) is exercised.
    out = patch_embed(x, conv_w, conv_b, ln_g, ln_b, patch_size=ps,
                      tile_n=24, compute_dtype=jnp.float32)
    out = jax.block_until_ready(out)
    assert out.shape == (B, Hp * Wp, E)
    assert jnp.allclose(out, ref, atol=1e-4, rtol=1e-4)

    # Default path: bf16 streamed operands, auto tile_n, f32 accumulation/LN.
    out_bf16 = patch_embed(x, conv_w, conv_b, ln_g, ln_b, patch_size=ps)
    out_bf16 = jax.block_until_ready(out_bf16)
    assert out_bf16.shape == (B, Hp * Wp, E)
    assert jnp.allclose(out_bf16, ref, atol=5e-2, rtol=5e-2)

    # bf16 streams + bf16 output with an explicit multi-block tile
    # (dtype-aware rounding keeps the sublane dim a multiple of 16).
    out_bf16_t = patch_embed(x, conv_w, conv_b, ln_g, ln_b, patch_size=ps,
                             tile_n=16, out_dtype=jnp.bfloat16)
    out_bf16_t = jax.block_until_ready(out_bf16_t)
    assert out_bf16_t.shape == (B, Hp * Wp, E)
    assert jnp.allclose(out_bf16_t.astype(jnp.float32), ref,
                        atol=6e-2, rtol=6e-2)

    print("KERNEL_OK")
</pallas_src>

<mosaic_0001>
module attributes {stable_mosaic.version = 11 : i64} {
  func.func @patch_embed_kernel(%arg0: i32, %arg1: memref<24x64xf32, #tpu.memory_space<vmem>>, %arg2: memref<64x128xf32, #tpu.memory_space<vmem>>, %arg3: memref<8x128xf32, #tpu.memory_space<vmem>>, %arg4: memref<24x128xf32, #tpu.memory_space<vmem>>) attributes {dimension_semantics = [#tpu.dimension_semantics<parallel>], iteration_bounds = array<i64: 2>, scalar_prefetch = 0 : i64, scratch_operands = 0 : i64, tpu.core_type = #tpu.core_type<tc>, window_params = [{transform_indices = @transform_0, window_bounds = array<i64: 24, 64>}, {pipeline_mode = #tpu.pipeline_mode<synchronous>, transform_indices = @transform_1, window_bounds = array<i64: 64, 128>}, {pipeline_mode = #tpu.pipeline_mode<synchronous>, transform_indices = @transform_2, window_bounds = array<i64: 8, 128>}, {transform_indices = @transform_3, window_bounds = array<i64: 24, 128>}]} {
    %c0 = arith.constant 0 : index
    %c0_0 = arith.constant 0 : index
    %0 = vector.load %arg1[%c0, %c0_0] : memref<24x64xf32, #tpu.memory_space<vmem>>, vector<24x64xf32>
    %c0_1 = arith.constant 0 : index
    %c0_2 = arith.constant 0 : index
    %1 = vector.load %arg2[%c0_1, %c0_2] : memref<64x128xf32, #tpu.memory_space<vmem>>, vector<64x128xf32>
    %cst = arith.constant dense<0.000000e+00> : vector<24x128xf32>
    %2 = tpu.matmul %0, %1, %cst {dimension_numbers = #tpu.dot_dimension_numbers<[1], [0], [0], [1], [0, 0, 1, 1], [], []>} : vector<24x64xf32>, vector<64x128xf32>, vector<24x128xf32> -> vector<24x128xf32>
    %c0_3 = arith.constant 0 : index
    %c0_4 = arith.constant 0 : index
    %3 = vector.load %arg3[%c0_3, %c0_4] : memref<8x128xf32, #tpu.memory_space<vmem>>, vector<1x128xf32>
    %4 = vector.broadcast %3 : vector<1x128xf32> to vector<24x128xf32>
    %5 = arith.addf %2, %4 : vector<24x128xf32>
    %cst_5 = arith.constant dense<0.000000e+00> : vector<24xf32>
    %6 = vector.multi_reduction <add>, %5, %cst_5 [1] : vector<24x128xf32> to vector<24xf32>
    %7 = vector.shape_cast %6 : vector<24xf32> to vector<24x1xf32>
    %cst_6 = arith.constant 3.125000e-02 : f32
    %8 = vector.broadcast %cst_6 : f32 to vector<24x1xf32>
    %9 = arith.mulf %7, %8 : vector<24x1xf32>
    %10 = vector.broadcast %9 : vector<24x1xf32> to vector<24x128xf32>
    %11 = arith.subf %5, %10 : vector<24x128xf32>
    %c3 = arith.constant 3 : index
    %c0_7 = arith.constant 0 : index
    %12 = vector.load %arg3[%c3, %c0_7] : memref<8x128xf32, #tpu.memory_space<vmem>>, vector<1x128xf32>
    %13 = vector.broadcast %12 : vector<1x128xf32> to vector<24x128xf32>
    %14 = arith.mulf %11, %13 : vector<24x128xf32>
    %15 = arith.mulf %14, %14 : vector<24x128xf32>
    %cst_8 = arith.constant dense<0.000000e+00> : vector<24xf32>
    %16 = vector.multi_reduction <add>, %15, %cst_8 [1] : vector<24x128xf32> to vector<24xf32>
    %17 = vector.shape_cast %16 : vector<24xf32> to vector<24x1xf32>
    %cst_9 = arith.constant 3.125000e-02 : f32
    %18 = vector.broadcast %cst_9 : f32 to vector<24x1xf32>
    %19 = arith.mulf %17, %18 : vector<24x1xf32>
    %cst_10 = arith.constant 9.99999974E-6 : f32
    %20 = vector.broadcast %cst_10 : f32 to vector<24x1xf32>
    %21 = arith.addf %19, %20 : vector<24x1xf32>
    %22 = math.rsqrt %21 : vector<24x1xf32>
    %23 = vector.broadcast %22 : vector<24x1xf32> to vector<24x128xf32>
    %24 = arith.mulf %14, %23 : vector<24x128xf32>
    %c1 = arith.constant 1 : index
    %c0_11 = arith.constant 0 : index
    %25 = vector.load %arg3[%c1, %c0_11] : memref<8x128xf32, #tpu.memory_space<vmem>>, vector<1x128xf32>
    %26 = vector.broadcast %25 : vector<1x128xf32> to vector<24x128xf32>
    %27 = arith.mulf %24, %26 : vector<24x128xf32>
    %c2 = arith.constant 2 : index
    %c0_12 = arith.constant 0 : index
    %28 = vector.load %arg3[%c2, %c0_12] : memref<8x128xf32, #tpu.memory_space<vmem>>, vector<1x128xf32>
    %29 = vector.broadcast %28 : vector<1x128xf32> to vector<24x128xf32>
    %30 = arith.addf %27, %29 : vector<24x128xf32>
    %c0_13 = arith.constant 0 : index
    %c0_14 = arith.constant 0 : index
    %31 = vector.load %arg4[%c0_13, %c0_14] : memref<24x128xf32, #tpu.memory_space<vmem>>, vector<24x128xf32>
    tpu.vector_store %arg4[%c0_13, %c0_14], %30 {strides = array<i32>} : memref<24x128xf32, #tpu.memory_space<vmem>>, vector<24x128xf32>,
    return
  }
  func.func @transform_0(%arg0: i32) -> (i32, i32) {
    %c0_i32 = arith.constant 0 : i32
    %c0_i32_0 = arith.constant 0 : i32
    return %arg0, %c0_i32 : i32, i32
  }
  func.func @transform_1(%arg0: i32) -> (i32, i32) {
    %c0_i32 = arith.constant 0 : i32
    %c0_i32_0 = arith.constant 0 : i32
    %c0_i32_1 = arith.constant 0 : i32
    return %c0_i32, %c0_i32_0 : i32, i32
  }
  func.func @transform_2(%arg0: i32) -> (i32, i32) {
    %c0_i32 = arith.constant 0 : i32
    %c0_i32_0 = arith.constant 0 : i32
    %c0_i32_1 = arith.constant 0 : i32
    return %c0_i32, %c0_i32_0 : i32, i32
  }
  func.func @transform_3(%arg0: i32) -> (i32, i32) {
    %c0_i32 = arith.constant 0 : i32
    %c0_i32_0 = arith.constant 0 : i32
    return %arg0, %c0_i32 : i32, i32
  }
}

</mosaic_0001>

<llo_original>
// kernel: tpu_custom_call.1
$region0: #{tpu_custom_call.1}
  #allocation0 [shape = 'u32[]', space=smem, size = 0x4, offset = 0x4, fixed_abs, tag = 'smem constant byte address 0x4 - core index']
  #allocation1 [shape = 'u32[72,128]{1,0:T(1,128)}', space=vmem, size = 0x9000, scoped, tag = 'internal scratch']
  %s0 = inlined_call_operand.hbm [shape: f32[32,64], index: 0, kind: input, shape index: {}]
  %s1 = inlined_call_operand.hbm [shape: f32[64,128], index: 1, kind: input, shape index: {}]
  %s2 = inlined_call_operand.hbm [shape: f32[8,128], index: 2, kind: input, shape index: {}]
  %s3 = inlined_call_operand.hbm [shape: f32[32,128], index: 3, kind: output, shape index: {}]
  %s4 = sld [smem:[#allocation0]]
  $region57: #{tpu_custom_call.1} parent=0
    _
  %s6 = ssub.s32 1, %s4
  %s7 = scalar_select 0, %s6, %s4
  $region1: #{tpu_custom_call.1} parent=0
    #allocation2 [shape = 'u8[24576]{0}', space=vmem, size = 0x6000, scoped, tag = 'input window, operand 0']
    #allocation3 [shape = 's32[2]{0}', space=sflag, size = 0x8, scoped, tag = 'scoped memory for tpu_custom_call.1']
    #allocation4 [shape = 's32[2]{0}', space=sflag, size = 0x8, scoped, tag = 'scoped memory for tpu_custom_call.1']
    #allocation5 [shape = 'u8[32768]{0}', space=vmem, size = 0x8000, scoped, tag = 'input window, operand 1, single buffered']
    #allocation6 [shape = 's32[1]{0}', space=sflag, size = 0x4, scoped, tag = 'scoped memory for tpu_custom_call.1']
    #allocation7 [shape = 'u8[4096]{0}', space=vmem, size = 0x1000, scoped, tag = 'input window, operand 2, single buffered']
    #allocation8 [shape = 'u8[24576]{0}', space=vmem, size = 0x6000, scoped, tag = 'output window, operand 0']
    %8 = vsyncpa [#allocation3], 0
    %s9 = scalar_lea.sflag [#allocation3], 1
    %10 = vsyncpa %s9, 0
    %11 = vsyncpa [#allocation6], 0
    %12 = vsyncpa [#allocation4], 0
    %s13 = scalar_lea.sflag [#allocation4], 1
    %14 = vsyncpa %s13, 0
    loop: start=0, step=1, limit=4
    $region2: #{tpu_custom_call.1} parent=1 // loop_pre_header
      _
    $region3: #{tpu_custom_call.1} parent=1 // loop_header
      %s16 = sphi 0, %s20
      %p17 = scmp.ge.s32.totalorder %s16, 4
      %s26 = sphi 0, %s28
      %s29 = sphi 0, %s26
      %s30 = sphi 0, %s29
      %s46 = sphi 0, %s30
      %s50 = sphi 0, %s50
      %s52 = sphi 0, %s50
      %s53 = sphi 0, %s52
      %s67 = sphi 0, %s53
      %s71 = sphi 0, %s71
      %s73 = sphi 0, %s71
      %s74 = sphi 0, %s73
      %s88 = sphi 0, %s74
      %s94 = sphi 0, %s96
      %s97 = sphi 0, %s94
      %s98 = sphi 0, %s97
      %s114 = sphi 0, %s98
    $region4: #{tpu_custom_call.1} parent=1 // loop_header_branch
      %19 = sbr.rel (%p17) target = $region8
    $region5: #{tpu_custom_call.1} parent=1 // loop_body
      %s21 = ssub.s32 %s16, 1
      %s22 = ssub.s32 %s16, 2
      %s23 = sadd.s32 %s16, 1
      %s24 = ssub.s32 %s16, %s23
      %p25 = scmp.eq.s32.totalorder %s24, 0
      %s27 = sadd.s32 %s26, 1
      %s28 = scalar_select %p25, %s26, %s27
      %p31 = pneg %p25
      %p32 = scmp.eq.s32.totalorder %s16, 1
      %p33 = por %p31, %p32
      %p34 = scmp.ne.s32.totalorder %s26, %s29
      %p35 = scmp.eq.s32.totalorder %s16, 0
      %p36 = por %p34, %p35
      %p37 = scmp.ne.s32.totalorder %s26, %s29
      %p38 = scmp.eq.s32.totalorder %s21, 1
      %p39 = por %p37, %p38
      %p40 = scmp.ne.s32.totalorder %s29, %s30
      %p41 = scmp.eq.s32.totalorder %s21, 0
      %p42 = por %p40, %p41
      %p43 = scmp.ne.s32.totalorder %s29, %s30
      %p44 = scmp.eq.s32.totalorder %s22, 1
      %p45 = por %p43, %p44
      %p47 = scmp.ne.s32.totalorder %s30, %s46
      %p48 = scmp.eq.s32.totalorder %s22, 0
      %p49 = por %p47, %p48
      %s51 = sadd.s32 %s50, 1
      %p54 = scmp.eq.s32.totalorder %s16, 1
      %p55 = scmp.ne.s32.totalorder %s50, %s52
      %p56 = scmp.eq.s32.totalorder %s16, 0
      %p57 = por %p55, %p56
      %p58 = scmp.ne.s32.totalorder %s50, %s52
      %p59 = scmp.eq.s32.totalorder %s21, 1
      %p60 = por %p58, %p59
      %p61 = scmp.ne.s32.totalorder %s52, %s53
      %p62 = scmp.eq.s32.totalorder %s21, 0
      %p63 = por %p61, %p62
      %p64 = scmp.ne.s32.totalorder %s52, %s53
      %p65 = scmp.eq.s32.totalorder %s22, 1
      %p66 = por %p64, %p65
      %p68 = scmp.ne.s32.totalorder %s53, %s67
      %p69 = scmp.eq.s32.totalorder %s22, 0
      %p70 = por %p68, %p69
      %s72 = sadd.s32 %s71, 1
      %p75 = scmp.eq.s32.totalorder %s16, 1
      %p76 = scmp.ne.s32.totalorder %s71, %s73
      %p77 = scmp.eq.s32.totalorder %s16, 0
      %p78 = por %p76, %p77
      %p79 = scmp.ne.s32.totalorder %s71, %s73
      %p80 = scmp.eq.s32.totalorder %s21, 1
      %p81 = por %p79, %p80
      %p82 = scmp.ne.s32.totalorder %s73, %s74
      %p83 = scmp.eq.s32.totalorder %s21, 0
      %p84 = por %p82, %p83
      %p85 = scmp.ne.s32.totalorder %s73, %s74
      %p86 = scmp.eq.s32.totalorder %s22, 1
      %p87 = por %p85, %p86
      %p89 = scmp.ne.s32.totalorder %s74, %s88
      %p90 = scmp.eq.s32.totalorder %s22, 0
      %p91 = por %p89, %p90
      %s92 = ssub.s32 %s16, %s23
      %p93 = scmp.eq.s32.totalorder %s92, 0
      %s95 = sadd.s32 %s94, 1
      %s96 = scalar_select %p93, %s94, %s95
      %p99 = pneg %p93
      %p100 = scmp.eq.s32.totalorder %s16, 1
      %p101 = por %p99, %p100
      %p102 = scmp.ne.s32.totalorder %s94, %s97
      %p103 = scmp.eq.s32.totalorder %s16, 0
      %p104 = por %p102, %p103
      %p105 = scmp.ne.s32.totalorder %s94, %s97
      %p106 = scmp.eq.s32.totalorder %s21, 1
      %p107 = por %p105, %p106
      %p108 = scmp.ne.s32.totalorder %s97, %s98
      %p109 = scmp.eq.s32.totalorder %s21, 0
      %p110 = por %p108, %p109
      %p111 = scmp.ne.s32.totalorder %s97, %s98
      %p112 = scmp.eq.s32.totalorder %s22, 1
      %p113 = por %p111, %p112
      %p115 = scmp.ne.s32.totalorder %s98, %s114
      %p116 = scmp.eq.s32.totalorder %s22, 0
      %p117 = por %p115, %p116
      %p118 = scmp.le.s32.totalorder 1, %s16
      %p119 = scmp.lt.s32.totalorder %s16, 3
      %p120 = pnand %p118, %p119
      %p121 = pneg %p120
      // Predicated region
      $region9: #{tpu_custom_call.1} parent=5 // pred_check
        _
      $region10: #{tpu_custom_call.1} parent=5 // pred_check_branch
        %123 = sbr.rel (%p120) target = $region12
      $region11: #{tpu_custom_call.1} parent=5 // pred_region
        %s124 = ssub.s32 %s16, 1
        // Predicated region
        $region13: #{tpu_custom_call.1} parent=11 // pred_check
          %p125 = pneg %p63
        $region14: #{tpu_custom_call.1} parent=11 // pred_check_branch
          %127 = sbr.rel (%p125) target = $region16
        $region15: #{tpu_custom_call.1} parent=11 // pred_region
          %129 = vsyncadd [#allocation6], 0
          %s130 = sshll.u32 %s1, 4
          %s131 = int_to_ptr.hbm [resolvable:$true] %s130
          %s132 = sshll.u32 [#allocation5], 4
          %s133 = int_to_ptr.vmem [resolvable:$true] %s132
          %138 = dma.hbm_to_vmem [thread:$0]  %s131, 1024, %s133, [#allocation6], 128, 128, 8
        $region16: #{tpu_custom_call.1} parent=11 // pred_fallthru
          _
        // Predicated region
        $region17: #{tpu_custom_call.1} parent=11 // pred_check
          %p139 = pneg %p84
        $region18: #{tpu_custom_call.1} parent=11 // pred_check_branch
          %141 = sbr.rel (%p139) target = $region20
        $region19: #{tpu_custom_call.1} parent=11 // pred_region
          %143 = vsyncadd [#allocation6], 0
          %s145 = sshll.u32 %s2, 4
          %s146 = int_to_ptr.hbm [resolvable:$true] %s145
          %s147 = sshll.u32 [#allocation7], 4
          %s148 = int_to_ptr.vmem [resolvable:$true] %s147
          %150 = dma.hbm_to_vmem [thread:$0]  %s146, 128, %s148, [#allocation6]
        $region20: #{tpu_custom_call.1} parent=11 // pred_fallthru
          _
      $region12: #{tpu_custom_call.1} parent=5 // pred_fallthru
        _
      %p151 = scmp.lt.s32.totalorder %s16, 2
      // Predicated region
      $region21: #{tpu_custom_call.1} parent=5 // pred_check
        %p152 = pneg %p151
      $region22: #{tpu_custom_call.1} parent=5 // pred_check_branch
        %154 = sbr.rel (%p152) target = $region24
      $region23: #{tpu_custom_call.1} parent=5 // pred_region
        // Predicated region
        $region25: #{tpu_custom_call.1} parent=23 // pred_check
          %p155 = pneg %p36
        $region26: #{tpu_custom_call.1} parent=23 // pred_check_branch
          %157 = sbr.rel (%p155) target = $region28
        $region27: #{tpu_custom_call.1} parent=23 // pred_region
          %s158 = sand.u32 %s26, 1
          %s159 = scalar_lea.sflag [#allocation3], %s158
          %s160 = sand.u32 %s26, 1
          %s161 = smul.addr %s160, 24
          %s162 = scalar_lea.vmem [#allocation2], %s161
          %s163 = smul.u32 3, %s16
          %s164 = ssub.s32 4, %s163
          %p165 = scmp.lt.s32.totalorder %s164, 3
          %s166 = scalar_select %p165, %s164, 3
          %s167 = smul.u32 8, %s166
          %s168 = ssub.s32 24, %s167
          %s169 = sshll.u32 %s168, 4
          %170 = vsyncadd %s159, %s169
          %p171 = scmp.ne.s32.totalorder 0, %s167
          %s172 = smul.addr %s163, 8
          %s173 = scalar_lea.hbm %s0, %s172
          %s174 = smul.u32 8, %s166
          %s175 = sshll.u32 %s173, 4
          %s176 = int_to_ptr.hbm [resolvable:$true] %s175
          %s177 = sshll.u32 %s162, 4
          %s178 = int_to_ptr.vmem [resolvable:$true] %s177
          %s179 = sshll.u32 %s174, 4
          %183 = dma.hbm_to_vmem [thread:$0]  (%p171), %s176, %s179, %s178, %s159, 128, 128, 8
        $region28: #{tpu_custom_call.1} parent=23 // pred_fallthru
          _
      $region24: #{tpu_custom_call.1} parent=5 // pred_fallthru
        _
      %p184 = scmp.le.s32.totalorder 1, %s16
      %p185 = scmp.lt.s32.totalorder %s16, 3
      %p186 = pnand %p184, %p185
      %p187 = pneg %p186
      // Predicated region
      $region29: #{tpu_custom_call.1} parent=5 // pred_check
        _
      $region30: #{tpu_custom_call.1} parent=5 // pred_check_branch
        %189 = sbr.rel (%p186) target = $region32
      $region31: #{tpu_custom_call.1} parent=5 // pred_region
        %s190 = ssub.s32 %s16, 1
        %s191 = sand.u32 %s29, 1
        %s192 = scalar_lea.sflag [#allocation3], %s191
        %s193 = sand.u32 %s29, 1
        %s194 = smul.addr %s193, 24
        %s195 = scalar_lea.vmem [#allocation2], %s194
        // Predicated region
        $region33: #{tpu_custom_call.1} parent=31 // pred_check
          %p196 = pneg %p42
        $region34: #{tpu_custom_call.1} parent=31 // pred_check_branch
          %198 = sbr.rel (%p196) target = $region36
        $region35: #{tpu_custom_call.1} parent=31 // pred_region
          %200 = dma.done %s192, 384
        $region36: #{tpu_custom_call.1} parent=31 // pred_fallthru
          _
        // Predicated region
        $region37: #{tpu_custom_call.1} parent=31 // pred_check
          %p201 = pneg %p63
        $region38: #{tpu_custom_call.1} parent=31 // pred_check_branch
          %203 = sbr.rel (%p201) target = $region40
        $region39: #{tpu_custom_call.1} parent=31 // pred_region
          %205 = dma.done [#allocation6], 1024
        $region40: #{tpu_custom_call.1} parent=31 // pred_fallthru
          _
        // Predicated region
        $region41: #{tpu_custom_call.1} parent=31 // pred_check
          %p206 = pneg %p84
        $region42: #{tpu_custom_call.1} parent=31 // pred_check_branch
          %208 = sbr.rel (%p206) target = $region44
        $region43: #{tpu_custom_call.1} parent=31 // pred_region
          %210 = dma.done [#allocation6], 128
        $region44: #{tpu_custom_call.1} parent=31 // pred_fallthru
          _
        %s211 = sand.u32 %s29, 1
        %s212 = scalar_lea.sflag [#allocation3], %s211
        %s213 = sand.u32 %s29, 1
        %s214 = smul.addr %s213, 24
        %s215 = scalar_lea.vmem [#allocation2], %s214
        %p216 = pneg %p42
        %p217 = pneg %p39
        %p218 = pneg %p63
        %p219 = pneg %p60
        %p220 = pneg %p84
        %p221 = pneg %p81
        %p222 = pneg %p110
        %p223 = pneg %p107
        %s224 = sand.u32 %s97, 1
        %s225 = scalar_lea.sflag [#allocation4], %s224
        %s226 = sand.u32 %s97, 1
        %s227 = smul.addr %s226, 24
        %s228 = scalar_lea.vmem [#allocation8], %s227
        %s229 = smul.u32 3, %s21
        %s230 = ssub.s32 4, %s229
        %p231 = scmp.lt.s32.totalorder %s230, 3
        %s232 = scalar_select %p231, %s230, 3
        %s233 = smul.u32 8, %s232
        %s234 = smul.u32 3, %s21
        %s235 = ssub.s32 4, %s234
        %p236 = scmp.lt.s32.totalorder %s235, 3
        %s237 = scalar_select %p236, %s235, 3
        %s238 = smul.u32 8, %s237
        %v239 = vld [vmem:[%s195] sm:$0xff]
        %v240 = vld [vmem:[%s195 + $0x8] sm:$0xff]
        %v241 = vld [vmem:[%s195 + $0x10] sm:$0xff]
        %v242 = vld [vmem:[#allocation5] sm:$0xff]
        %v243 = vld [vmem:[#allocation5 + $0x8] sm:$0xff]
        %v244 = vld [vmem:[#allocation5 + $0x10] sm:$0xff]
        %v245 = vld [vmem:[#allocation5 + $0x18] sm:$0xff]
        %v246 = vld [vmem:[#allocation5 + $0x20] sm:$0xff]
        %v247 = vld [vmem:[#allocation5 + $0x28] sm:$0xff]
        %v248 = vld [vmem:[#allocation5 + $0x30] sm:$0xff]
        %v249 = vld [vmem:[#allocation5 + $0x38] sm:$0xff]
        %v250 = vld [vmem:[#allocation7] sm:$0x1]
        %v251 = vperm.slane %v250, 0
        %vm252 = vcmask 523264
        %v254 = vsel %vm252, %v239, 0
        %v257 = vsel %vm252, %v240, 0
        %v260 = vsel %vm252, %v241, 0
        %262 = vmatpush.msra.mxu0 0.0
        %263 = vmatpush.msra.mxu0 0.0
        %264 = vmatpush.msra.mxu0 0.0
        %265 = vmatpush.msra.mxu0 0.0
        %266 = vmatpush.msra.mxu0 0.0
        %267 = vmatpush.msra.mxu0 0.0
        %268 = vmatpush.msra.mxu0 0.0
        %269 = vmatpush.msra.mxu0 0.0
        %270 = vmatpush.msra.mxu0 %v249
        %271 = vmatpush.msra.mxu0 %v248
        %272 = vmatpush.msra.mxu0 %v247
        %273 = vmatpush.msra.mxu0 %v246
        %274 = vmatpush.msra.mxu0 %v245
        %275 = vmatpush.msra.mxu0 %v244
        %276 = vmatpush.msra.mxu0 %v243
        %277 = vmatpush.msra.mxu0 %v242
        %278 = vmatmul.f32.gmra.mxu0 %v254
        %v279 = vpop.f32.mrf.mxu0
        %v280 = vadd.f32 %v251, %v279
        %281 = vmatmul.f32.gmra.mxu0 %v257
        %v282 = vpop.f32.mrf.mxu0
        %v283 = vadd.f32 %v251, %v282
        %284 = vmatmul.f32.gmra.mxu0 %v260
        %v285 = vpop.f32.mrf.mxu0
        %v286 = vadd.f32 %v251, %v285
        %287 = vdwg.mxu0
        %288 = vadd.xlane.f32.xlu0 %v280
        %v289 = vpop.xlane.xlu0 %288
        %290 = vadd.xlane.f32.xlu0 %v283
        %v291 = vpop.xlane.xlu0 %290
        %292 = vadd.xlane.f32.xlu0 %v286
        %v293 = vpop.xlane.xlu0 %292
        %v294 = vmul.f32 %v289, 0.03125
        %v295 = vmul.f32 %v291, 0.03125
        %v296 = vmul.f32 %v293, 0.03125
        %v297 = vsub.f32 %v280, %v294
        %v298 = vsub.f32 %v283, %v295
        %v299 = vsub.f32 %v286, %v296
        %v300 = vld [vmem:[#allocation7 + $0x3] sm:$0x1]
        %v301 = vperm.slane %v300, 0
        %v302 = vmul.f32 %v297, %v301
        %v303 = vmul.f32 %v298, %v301
        %v304 = vmul.f32 %v299, %v301
        %v305 = vmul.f32 %v302, %v302
        %v306 = vmul.f32 %v303, %v303
        %v307 = vmul.f32 %v304, %v304
        %308 = vadd.xlane.f32.xlu0 %v305
        %v309 = vpop.xlane.xlu0 %308
        %310 = vadd.xlane.f32.xlu0 %v306
        %v311 = vpop.xlane.xlu0 %310
        %312 = vadd.xlane.f32.xlu0 %v307
        %v313 = vpop.xlane.xlu0 %312
        %v314 = vmul.f32 %v309, 0.03125
        %v315 = vmul.f32 %v311, 0.03125
        %v316 = vmul.f32 %v313, 0.03125
        %v317 = vadd.f32 %v314, 1e-05
        %v318 = vadd.f32 %v315, 1e-05
        %v319 = vadd.f32 %v316, 1e-05
        %v320 = vrsqrt.pop %v317
        %v321 = vmul.f32 %v320, %v317
        %v322 = vmul.f32 %v321, %v320
        %v323 = vmul.f32 0.5, %v322
        %v324 = vsub.f32 1.5, %v323
        %v325 = vmul.f32 %v320, %v324
        %vm326 = vweird.f32 %v317
        %vm327 = vweird.f32 %v320
        %vm328 = vmor %vm326, %vm327
        %v329 = vsel %vm328, %v320, %v325
        %v330 = vrsqrt.pop %v318
        %v331 = vmul.f32 %v330, %v318
        %v332 = vmul.f32 %v331, %v330
        %v333 = vmul.f32 0.5, %v332
        %v334 = vsub.f32 1.5, %v333
        %v335 = vmul.f32 %v330, %v334
        %vm336 = vweird.f32 %v318
        %vm337 = vweird.f32 %v330
        %vm338 = vmor %vm336, %vm337
        %v339 = vsel %vm338, %v330, %v335
        %v340 = vrsqrt.pop %v319
        %v341 = vmul.f32 %v340, %v319
        %v342 = vmul.f32 %v341, %v340
        %v343 = vmul.f32 0.5, %v342
        %v344 = vsub.f32 1.5, %v343
        %v345 = vmul.f32 %v340, %v344
        %vm346 = vweird.f32 %v319
        %vm347 = vweird.f32 %v340
        %vm348 = vmor %vm346, %vm347
        %v349 = vsel %vm348, %v340, %v345
        %v350 = vmul.f32 %v302, %v329
        %v351 = vmul.f32 %v303, %v339
        %v352 = vmul.f32 %v304, %v349
        %v353 = vld [vmem:[#allocation7 + $0x1] sm:$0x1]
        %v354 = vperm.slane %v353, 0
        %v355 = vmul.f32 %v350, %v354
        %v356 = vmul.f32 %v351, %v354
        %v357 = vmul.f32 %v352, %v354
        %v358 = vld [vmem:[#allocation7 + $0x2] sm:$0x1]
        %v359 = vperm.slane %v358, 0
        %v360 = vadd.f32 %v355, %v359
        %v361 = vadd.f32 %v356, %v359
        %v362 = vadd.f32 %v357, %v359
        %363 = vst [vmem:[%s228] sm:$0xff] %v360
        %364 = vst [vmem:[%s228 + $0x8] sm:$0xff] %v361
        %365 = vst [vmem:[%s228 + $0x10] sm:$0xff] %v362
        %s366 = sand.u32 %s97, 1
        %s367 = scalar_lea.sflag [#allocation4], %s366
        %s368 = sand.u32 %s97, 1
        %s369 = smul.addr %s368, 24
        %s370 = scalar_lea.vmem [#allocation8], %s369
        // Predicated region
        $region45: #{tpu_custom_call.1} parent=31 // pred_check
          %p371 = pneg %p107
        $region46: #{tpu_custom_call.1} parent=31 // pred_check_branch
          %373 = sbr.rel (%p371) target = $region48
        $region47: #{tpu_custom_call.1} parent=31 // pred_region
          %s374 = smul.u32 3, %s21
          %s375 = ssub.s32 4, %s374
          %p376 = scmp.lt.s32.totalorder %s375, 3
          %s377 = scalar_select %p376, %s375, 3
          %s378 = smul.u32 8, %s377
          %s379 = ssub.s32 24, %s378
          %s380 = sshll.u32 %s379, 4
          %381 = vsyncadd %s367, %s380
          %p382 = scmp.ne.s32.totalorder 0, %s378
          %s383 = smul.addr %s374, 8
          %s384 = scalar_lea.hbm %s3, %s383
          %s385 = smul.u32 8, %s377
          %s386 = sshll.u32 %s370, 4
          %s387 = int_to_ptr.vmem [resolvable:$true] %s386
          %s388 = sshll.u32 %s384, 4
          %s389 = int_to_ptr.hbm [resolvable:$true] %s388
          %s390 = sshll.u32 %s385, 4
          %394 = dma.vmem_to_hbm [thread:$0]  (%p382), %s387, %s390, %s389, %s367, 128, 128, 8
        $region48: #{tpu_custom_call.1} parent=31 // pred_fallthru
          _
      $region32: #{tpu_custom_call.1} parent=5 // pred_fallthru
        _
      %p395 = scmp.le.s32.totalorder 2, %s16
      // Predicated region
      $region49: #{tpu_custom_call.1} parent=5 // pred_check
        %p396 = pneg %p395
      $region50: #{tpu_custom_call.1} parent=5 // pred_check_branch
        %398 = sbr.rel (%p396) target = $region52
      $region51: #{tpu_custom_call.1} parent=5 // pred_region
        %s399 = ssub.s32 %s16, 2
        // Predicated region
        $region53: #{tpu_custom_call.1} parent=51 // pred_check
          %p400 = pneg %p113
        $region54: #{tpu_custom_call.1} parent=51 // pred_check_branch
          %402 = sbr.rel (%p400) target = $region56
        $region55: #{tpu_custom_call.1} parent=51 // pred_region
          %s403 = sand.u32 %s98, 1
          %s404 = scalar_lea.sflag [#allocation4], %s403
          %s405 = sand.u32 %s98, 1
          %s406 = smul.addr %s405, 24
          %s407 = scalar_lea.vmem [#allocation8], %s406
          %409 = dma.done %s404, 384
        $region56: #{tpu_custom_call.1} parent=51 // pred_fallthru
          _
      $region52: #{tpu_custom_call.1} parent=5 // pred_fallthru
        _
    $region6: #{tpu_custom_call.1} parent=1 // loop_footer
      %s20 = sadd.s32 1, %s16
    $region7: #{tpu_custom_call.1} parent=1 // loop_footer_branch
      %15 = sbr.rel target = $region3
    $region8: #{tpu_custom_call.1} parent=1 // loop_exit
      _
    %410 = vsyncpa [#allocation3], 1
    %s411 = scalar_lea.sflag [#allocation3], 1
    %412 = vsyncpa %s411, 1
    %413 = vsyncpa [#allocation6], 1
    %414 = vsyncpa [#allocation4], 1
    %s415 = scalar_lea.sflag [#allocation4], 1
    %416 = vsyncpa %s415, 1

</llo_original>
